<compile_context>
chip_gen: v7x
topology: tpu7x:2x2x1
jax: 0.10.0
libtpu: 0.0.40
codegen_flags: <defaults>
</compile_context>

<pallas_src>
import jax
import jax.numpy as jnp
from jax.experimental import pallas as pl
from jax.experimental.pallas import tpu as pltpu


def _round_up(x, m):
    return ((x + m - 1) // m) * m


def _diffusion_mlp_kernel(x_ref, w1_ref, b1_ref, w2_ref, b2_ref, w3_ref, b3_ref,
                          out_ref):
    x = x_ref[...]
    in_dim = x.shape[-1]

    def mxu_dot(a, w_ref):
        w = w_ref[...]
        if w.dtype != jnp.float32:
            a = a.astype(w.dtype)          # bf16 x bf16 -> single-pass MXU
        return jnp.dot(a, w, preferred_element_type=jnp.float32)

    # fc1 + ReLU.  K = input_dim (e.g. 4) is ~3% of the MXU contraction depth,
    # so do it on the VPU as K broadcast multiply-adds; f32 accumulation.
    if in_dim <= 8:
        h1 = b1_ref[...].astype(jnp.float32)                     # (1, H)
        for k in range(in_dim):
            h1 = h1 + (x[:, k:k + 1].astype(jnp.float32)
                       * w1_ref[k:k + 1, :].astype(jnp.float32))
    else:
        h1 = mxu_dot(x, w1_ref) + b1_ref[...]
    h1 = jnp.maximum(h1, 0.0)

    # fc2 + ReLU (MXU, f32 accumulation)
    h2 = jnp.maximum(mxu_dot(h1, w2_ref) + b2_ref[...], 0.0)

    # fc3 (no activation); output keeps its true feature width (no lane pad).
    out = mxu_dot(h2, w3_ref) + b3_ref[...]
    out_ref[...] = out.astype(out_ref.dtype)


def prepare_params(params, weight_dtype=None):
    """One-time parameter prep (hoisted out of the per-call path).

    Biases become (1, N) rows so they live in 2-D VMEM tiles and broadcast;
    weights may optionally be cast (e.g. bf16 halves weight DMA/VMEM).
    """
    w1, b1, w2, b2, w3, b3 = params
    if weight_dtype is not None:
        w1, w2, w3 = (w.astype(weight_dtype) for w in (w1, w2, w3))
    f32 = jnp.float32
    return (w1, b1.reshape(1, -1).astype(f32),
            w2, b2.reshape(1, -1).astype(f32),
            w3, b3.reshape(1, -1).astype(f32))


def diffusion_forward(x, prepared_params, *, block_batch=8192):
    """Pallas equivalent of Diffusion.forward: fc3(relu(fc2(relu(fc1(x)))))."""
    w1, b1r, w2, b2r, w3, b3r = prepared_params
    batch, input_dim = x.shape
    hidden_dim = w1.shape[1]
    out_dim = w3.shape[1]

    # ---- batch tiling (multiple of 8 sublanes; partial last block allowed) ----
    tb = _round_up(min(block_batch, max(batch, 8)), 8)
    # v7x has 2 TensorCores: make sure the "parallel" batch axis has >= 2 grid
    # steps when the batch is big enough to split, otherwise one core idles.
    if tb >= batch and batch >= 16:
        tb = _round_up(pl.cdiv(batch, 2), 8)
    grid = (pl.cdiv(batch, tb),)

    # Weights/biases: full-array blocks with a constant index_map -> resident
    # in VMEM across every batch tile (no per-step weight re-DMA).
    def resident(arr):
        return pl.BlockSpec(arr.shape, lambda i, _nd=arr.ndim: (0,) * _nd)

    nbytes = lambda a: a.size * a.dtype.itemsize
    flops = 2 * batch * (input_dim * hidden_dim
                         + hidden_dim * hidden_dim
                         + hidden_dim * out_dim)
    bytes_accessed = (nbytes(x) + nbytes(w1) + nbytes(w2) + nbytes(w3)
                      + nbytes(b1r) + nbytes(b2r) + nbytes(b3r)
                      + batch * out_dim * x.dtype.itemsize)

    return pl.pallas_call(
        _diffusion_mlp_kernel,
        out_shape=jax.ShapeDtypeStruct((batch, out_dim), x.dtype),
        grid=grid,
        in_specs=[
            pl.BlockSpec((tb, input_dim), lambda i: (i, 0)),   # x: batch-tiled
            resident(w1), resident(b1r),
            resident(w2), resident(b2r),
            resident(w3), resident(b3r),
        ],
        out_specs=pl.BlockSpec((tb, out_dim), lambda i: (i, 0)),
        compiler_params=pltpu.CompilerParams(
            dimension_semantics=("parallel",),          # both TCs on v7x
            vmem_limit_bytes=48 * 1024 * 1024),          # big tiles on v5e/v7x
        cost_estimate=pl.CostEstimate(
            flops=flops, transcendentals=0, bytes_accessed=bytes_accessed),
    )(x, w1, b1r, w2, b2r, w3, b3r)


def init_params(key, input_dim=4, hidden_dim=64, dtype=jnp.float32):
    """Deterministic init mimicking nn.Linear default (uniform +/- 1/sqrt(fan_in))."""
    ks = jax.random.split(key, 6)

    def linear(kw, kb, fan_in, fan_out):
        bound = 1.0 / jnp.sqrt(jnp.float32(fan_in))
        w = jax.random.uniform(kw, (fan_in, fan_out), dtype, -bound, bound)
        b = jax.random.uniform(kb, (fan_out,), dtype, -bound, bound)
        return w, b

    w1, b1 = linear(ks[0], ks[1], input_dim, hidden_dim)
    w2, b2 = linear(ks[2], ks[3], hidden_dim, hidden_dim)
    w3, b3 = linear(ks[4], ks[5], hidden_dim, input_dim)
    return (w1, b1, w2, b2, w3, b3)


def reference_forward(x, params):
    w1, b1, w2, b2, w3, b3 = params
    h1 = jnp.maximum(x @ w1 + b1, 0.0)
    h2 = jnp.maximum(h1 @ w2 + b2, 0.0)
    return h2 @ w3 + b3


if __name__ == "__main__":
    key = jax.random.PRNGKey(0)
    k_params, k_x, k_x2 = jax.random.split(key, 3)

    input_dim, hidden_dim = 4, 64
    raw_params = init_params(k_params, input_dim=input_dim, hidden_dim=hidden_dim)
    params = prepare_params(raw_params)            # one-time prep (hoisted)

    fwd = jax.jit(diffusion_forward)

    # --- tiny batch ---
    batch = 8
    x = jax.random.normal(k_x, (batch, input_dim), dtype=jnp.float32)
    out = jax.block_until_ready(fwd(x, params))
    ref = reference_forward(x, raw_params)
    assert out.shape == (batch, input_dim)
    assert jnp.allclose(out, ref, atol=1e-5, rtol=1e-5)

    # --- batch like generate(num_samples=150): 2-step grid + partial last block ---
    batch2 = 150
    x2 = jax.random.normal(k_x2, (batch2, input_dim), dtype=jnp.float32)
    out2 = jax.block_until_ready(fwd(x2, params))
    ref2 = reference_forward(x2, raw_params)
    assert out2.shape == (batch2, input_dim)
    assert jnp.allclose(out2, ref2, atol=1e-5, rtol=1e-5)

    # --- bf16 weights: halves weight DMA/VMEM; MXU fed bf16 x bf16, f32 acc ---
    params_bf16 = prepare_params(raw_params, weight_dtype=jnp.bfloat16)
    out3 = jax.block_until_ready(fwd(x2, params_bf16))
    assert jnp.allclose(out3, ref2, atol=3e-2, rtol=3e-2)   # bf16-fed MXU tolerance

    print("KERNEL_OK")
</pallas_src>

<mosaic_0001>
module attributes {stable_mosaic.version = 11 : i64} {
  func.func @_diffusion_mlp_kernel(%arg0: i32, %arg1: memref<8x4xf32, #tpu.memory_space<vmem>>, %arg2: memref<4x64xf32, #tpu.memory_space<vmem>>, %arg3: memref<1x64xf32, #tpu.memory_space<vmem>>, %arg4: memref<64x64xf32, #tpu.memory_space<vmem>>, %arg5: memref<1x64xf32, #tpu.memory_space<vmem>>, %arg6: memref<64x4xf32, #tpu.memory_space<vmem>>, %arg7: memref<1x4xf32, #tpu.memory_space<vmem>>, %arg8: memref<8x4xf32, #tpu.memory_space<vmem>>) attributes {dimension_semantics = [#tpu.dimension_semantics<parallel>], iteration_bounds = array<i64: 1>, scalar_prefetch = 0 : i64, scratch_operands = 0 : i64, tpu.core_type = #tpu.core_type<tc>, window_params = [{transform_indices = @transform_0, window_bounds = array<i64: 8, 4>}, {pipeline_mode = #tpu.pipeline_mode<synchronous>, transform_indices = @transform_1, window_bounds = array<i64: 4, 64>}, {pipeline_mode = #tpu.pipeline_mode<synchronous>, transform_indices = @transform_2, window_bounds = array<i64: 1, 64>}, {pipeline_mode = #tpu.pipeline_mode<synchronous>, transform_indices = @transform_3, window_bounds = array<i64: 64, 64>}, {pipeline_mode = #tpu.pipeline_mode<synchronous>, transform_indices = @transform_4, window_bounds = array<i64: 1, 64>}, {pipeline_mode = #tpu.pipeline_mode<synchronous>, transform_indices = @transform_5, window_bounds = array<i64: 64, 4>}, {pipeline_mode = #tpu.pipeline_mode<synchronous>, transform_indices = @transform_6, window_bounds = array<i64: 1, 4>}, {transform_indices = @transform_7, window_bounds = array<i64: 8, 4>}]} {
    %c0 = arith.constant 0 : index
    %c0_0 = arith.constant 0 : index
    %0 = vector.load %arg1[%c0, %c0_0] : memref<8x4xf32, #tpu.memory_space<vmem>>, vector<8x4xf32>
    %c0_1 = arith.constant 0 : index
    %c0_2 = arith.constant 0 : index
    %1 = vector.load %arg3[%c0_1, %c0_2] : memref<1x64xf32, #tpu.memory_space<vmem>>, vector<1x64xf32>
    %2 = vector.extract_strided_slice %0 {offsets = [0, 0], sizes = [8, 1], strides = [1, 1]} : vector<8x4xf32> to vector<8x1xf32>
    %c0_3 = arith.constant 0 : index
    %c0_4 = arith.constant 0 : index
    %3 = vector.load %arg2[%c0_3, %c0_4] : memref<4x64xf32, #tpu.memory_space<vmem>>, vector<1x64xf32>
    %4 = vector.broadcast %2 : vector<8x1xf32> to vector<8x64xf32>
    %5 = vector.broadcast %3 : vector<1x64xf32> to vector<8x64xf32>
    %6 = arith.mulf %4, %5 : vector<8x64xf32>
    %7 = vector.broadcast %1 : vector<1x64xf32> to vector<8x64xf32>
    %8 = arith.addf %7, %6 : vector<8x64xf32>
    %9 = vector.extract_strided_slice %0 {offsets = [0, 1], sizes = [8, 1], strides = [1, 1]} : vector<8x4xf32> to vector<8x1xf32>
    %c1 = arith.constant 1 : index
    %c0_5 = arith.constant 0 : index
    %10 = vector.load %arg2[%c1, %c0_5] : memref<4x64xf32, #tpu.memory_space<vmem>>, vector<1x64xf32>
    %11 = vector.broadcast %9 : vector<8x1xf32> to vector<8x64xf32>
    %12 = vector.broadcast %10 : vector<1x64xf32> to vector<8x64xf32>
    %13 = arith.mulf %11, %12 : vector<8x64xf32>
    %14 = arith.addf %8, %13 : vector<8x64xf32>
    %15 = vector.extract_strided_slice %0 {offsets = [0, 2], sizes = [8, 1], strides = [1, 1]} : vector<8x4xf32> to vector<8x1xf32>
    %c2 = arith.constant 2 : index
    %c0_6 = arith.constant 0 : index
    %16 = vector.load %arg2[%c2, %c0_6] : memref<4x64xf32, #tpu.memory_space<vmem>>, vector<1x64xf32>
    %17 = vector.broadcast %15 : vector<8x1xf32> to vector<8x64xf32>
    %18 = vector.broadcast %16 : vector<1x64xf32> to vector<8x64xf32>
    %19 = arith.mulf %17, %18 : vector<8x64xf32>
    %20 = arith.addf %14, %19 : vector<8x64xf32>
    %21 = vector.extract_strided_slice %0 {offsets = [0, 3], sizes = [8, 1], strides = [1, 1]} : vector<8x4xf32> to vector<8x1xf32>
    %c3 = arith.constant 3 : index
    %c0_7 = arith.constant 0 : index
    %22 = vector.load %arg2[%c3, %c0_7] : memref<4x64xf32, #tpu.memory_space<vmem>>, vector<1x64xf32>
    %23 = vector.broadcast %21 : vector<8x1xf32> to vector<8x64xf32>
    %24 = vector.broadcast %22 : vector<1x64xf32> to vector<8x64xf32>
    %25 = arith.mulf %23, %24 : vector<8x64xf32>
    %26 = arith.addf %20, %25 : vector<8x64xf32>
    %cst = arith.constant 0.000000e+00 : f32
    %27 = vector.broadcast %cst : f32 to vector<8x64xf32>
    %28 = arith.maximumf %26, %27 : vector<8x64xf32>
    %c0_8 = arith.constant 0 : index
    %c0_9 = arith.constant 0 : index
    %29 = vector.load %arg4[%c0_8, %c0_9] : memref<64x64xf32, #tpu.memory_space<vmem>>, vector<64x64xf32>
    %cst_10 = arith.constant dense<0.000000e+00> : vector<8x64xf32>
    %30 = tpu.matmul %28, %29, %cst_10 {dimension_numbers = #tpu.dot_dimension_numbers<[1], [0], [0], [1], [0, 0, 1, 1], [], []>} : vector<8x64xf32>, vector<64x64xf32>, vector<8x64xf32> -> vector<8x64xf32>
    %c0_11 = arith.constant 0 : index
    %c0_12 = arith.constant 0 : index
    %31 = vector.load %arg5[%c0_11, %c0_12] : memref<1x64xf32, #tpu.memory_space<vmem>>, vector<1x64xf32>
    %32 = vector.broadcast %31 : vector<1x64xf32> to vector<8x64xf32>
    %33 = arith.addf %30, %32 : vector<8x64xf32>
    %cst_13 = arith.constant 0.000000e+00 : f32
    %34 = vector.broadcast %cst_13 : f32 to vector<8x64xf32>
    %35 = arith.maximumf %33, %34 : vector<8x64xf32>
    %c0_14 = arith.constant 0 : index
    %c0_15 = arith.constant 0 : index
    %36 = vector.load %arg6[%c0_14, %c0_15] : memref<64x4xf32, #tpu.memory_space<vmem>>, vector<64x4xf32>
    %cst_16 = arith.constant dense<0.000000e+00> : vector<8x4xf32>
    %37 = tpu.matmul %35, %36, %cst_16 {dimension_numbers = #tpu.dot_dimension_numbers<[1], [0], [0], [1], [0, 0, 1, 1], [], []>} : vector<8x64xf32>, vector<64x4xf32>, vector<8x4xf32> -> vector<8x4xf32>
    %c0_17 = arith.constant 0 : index
    %c0_18 = arith.constant 0 : index
    %38 = vector.load %arg7[%c0_17, %c0_18] : memref<1x4xf32, #tpu.memory_space<vmem>>, vector<1x4xf32>
    %39 = vector.broadcast %38 : vector<1x4xf32> to vector<8x4xf32>
    %40 = arith.addf %37, %39 : vector<8x4xf32>
    %c0_19 = arith.constant 0 : index
    %c0_20 = arith.constant 0 : index
    %41 = vector.load %arg8[%c0_19, %c0_20] : memref<8x4xf32, #tpu.memory_space<vmem>>, vector<8x4xf32>
    tpu.vector_store %arg8[%c0_19, %c0_20], %40 {strides = array<i32>} : memref<8x4xf32, #tpu.memory_space<vmem>>, vector<8x4xf32>,
    return
  }
  func.func @transform_0(%arg0: i32) -> (i32, i32) {
    %c0_i32 = arith.constant 0 : i32
    %c0_i32_0 = arith.constant 0 : i32
    return %arg0, %c0_i32 : i32, i32
  }
  func.func @transform_1(%arg0: i32) -> (i32, i32) {
    %c0_i32 = arith.constant 0 : i32
    %c0_i32_0 = arith.constant 0 : i32
    %c0_i32_1 = arith.constant 0 : i32
    return %c0_i32, %c0_i32_0 : i32, i32
  }
  func.func @transform_2(%arg0: i32) -> (i32, i32) {
    %c0_i32 = arith.constant 0 : i32
    %c0_i32_0 = arith.constant 0 : i32
    %c0_i32_1 = arith.constant 0 : i32
    return %c0_i32, %c0_i32_0 : i32, i32
  }
  func.func @transform_3(%arg0: i32) -> (i32, i32) {
    %c0_i32 = arith.constant 0 : i32
    %c0_i32_0 = arith.constant 0 : i32
    %c0_i32_1 = arith.constant 0 : i32
    return %c0_i32, %c0_i32_0 : i32, i32
  }
  func.func @transform_4(%arg0: i32) -> (i32, i32) {
    %c0_i32 = arith.constant 0 : i32
    %c0_i32_0 = arith.constant 0 : i32
    %c0_i32_1 = arith.constant 0 : i32
    return %c0_i32, %c0_i32_0 : i32, i32
  }
  func.func @transform_5(%arg0: i32) -> (i32, i32) {
    %c0_i32 = arith.constant 0 : i32
    %c0_i32_0 = arith.constant 0 : i32
    %c0_i32_1 = arith.constant 0 : i32
    return %c0_i32, %c0_i32_0 : i32, i32
  }
  func.func @transform_6(%arg0: i32) -> (i32, i32) {
    %c0_i32 = arith.constant 0 : i32
    %c0_i32_0 = arith.constant 0 : i32
    %c0_i32_1 = arith.constant 0 : i32
    return %c0_i32, %c0_i32_0 : i32, i32
  }
  func.func @transform_7(%arg0: i32) -> (i32, i32) {
    %c0_i32 = arith.constant 0 : i32
    %c0_i32_0 = arith.constant 0 : i32
    return %arg0, %c0_i32 : i32, i32
  }
}

</mosaic_0001>

<llo_original>
// kernel: diffusion_forward.1
$region0: #{diffusion_forward.1}
  #allocation0 [shape = 'u32[]', space=smem, size = 0x4, offset = 0x4, fixed_abs, tag = 'smem constant byte address 0x4 - core index']
  #allocation1 [shape = 'u32[144,128]{1,0:T(1,128)}', space=vmem, size = 0x12000, scoped, tag = 'internal scratch']
  %s0 = inlined_call_operand.vmem [shape: f32[8,4], index: 0, kind: input, shape index: {}]
  %s1 = inlined_call_operand.vmem [shape: f32[4,64], index: 1, kind: input, shape index: {}]
  %s2 = inlined_call_operand.vmem [shape: f32[1,64], index: 2, kind: input, shape index: {}]
  %s3 = inlined_call_operand.vmem [shape: f32[64,64], index: 3, kind: input, shape index: {}]
  %s4 = inlined_call_operand.vmem [shape: f32[1,64], index: 4, kind: input, shape index: {}]
  %s5 = inlined_call_operand.vmem [shape: f32[64,4], index: 5, kind: input, shape index: {}]
  %s6 = inlined_call_operand.vmem [shape: f32[1,4], index: 6, kind: input, shape index: {}]
  %s7 = inlined_call_operand.vmem [shape: f32[8,4], index: 7, kind: output, shape index: {}]
  %s8 = sld [smem:[#allocation0]]
  $region38: #{diffusion_forward.1} parent=0
    _
  %s10 = ssub.s32 1, %s8
  %s11 = scalar_select 0, %s10, %s8
  // Predicated region
  $region2: #{diffusion_forward.1} parent=0 // pred_check
    _
  $region3: #{diffusion_forward.1} parent=0 // pred_check_branch
    %13 = sbr.rel (0) target = $region5
  $region4: #{diffusion_forward.1} parent=0 // pred_region
    _
  $region5: #{diffusion_forward.1} parent=0 // pred_fallthru
    _
  // Predicated region
  $region6: #{diffusion_forward.1} parent=0 // pred_check
    _
  $region7: #{diffusion_forward.1} parent=0 // pred_check_branch
    %15 = sbr.rel (0) target = $region9
  $region8: #{diffusion_forward.1} parent=0 // pred_region
    _
  $region9: #{diffusion_forward.1} parent=0 // pred_fallthru
    _
  // Predicated region
  $region10: #{diffusion_forward.1} parent=0 // pred_check
    _
  $region11: #{diffusion_forward.1} parent=0 // pred_check_branch
    %17 = sbr.rel (0) target = $region13
  $region12: #{diffusion_forward.1} parent=0 // pred_region
    _
  $region13: #{diffusion_forward.1} parent=0 // pred_fallthru
    _
  // Predicated region
  $region14: #{diffusion_forward.1} parent=0 // pred_check
    _
  $region15: #{diffusion_forward.1} parent=0 // pred_check_branch
    %19 = sbr.rel (0) target = $region17
  $region16: #{diffusion_forward.1} parent=0 // pred_region
    _
  $region17: #{diffusion_forward.1} parent=0 // pred_fallthru
    _
  // Predicated region
  $region18: #{diffusion_forward.1} parent=0 // pred_check
    _
  $region19: #{diffusion_forward.1} parent=0 // pred_check_branch
    %21 = sbr.rel (0) target = $region21
  $region20: #{diffusion_forward.1} parent=0 // pred_region
    _
  $region21: #{diffusion_forward.1} parent=0 // pred_fallthru
    _
  // Predicated region
  $region22: #{diffusion_forward.1} parent=0 // pred_check
    _
  $region23: #{diffusion_forward.1} parent=0 // pred_check_branch
    %23 = sbr.rel (0) target = $region25
  $region24: #{diffusion_forward.1} parent=0 // pred_region
    _
  $region25: #{diffusion_forward.1} parent=0 // pred_fallthru
    _
  // Predicated region
  $region26: #{diffusion_forward.1} parent=0 // pred_check
    _
  $region27: #{diffusion_forward.1} parent=0 // pred_check_branch
    %25 = sbr.rel (0) target = $region29
  $region28: #{diffusion_forward.1} parent=0 // pred_region
    _
  $region29: #{diffusion_forward.1} parent=0 // pred_fallthru
    _
  %v26 = vld [vmem:[%s0] sm:$0xff]
  %v27 = vld [vmem:[%s2] sm:$0x1]
  %v28 = vld [vmem:[%s1] sm:$0x1]
  %30 = vset.pattern.permute.xlu0 0
  %31 = vperm.xlu0 %30, %v26
  %v32 = vpop.permute.xlu0 %31
  %v34 = vlaneseq
  %v35 = vshrl.u32 %v34, 7
  %v36 = vsub.s32 0, %v35
  %v37 = vrot.slane %v28, %v36
  %v38 = vmul.f32 %v32, %v37
  %v40 = vlaneseq
  %v41 = vshrl.u32 %v40, 7
  %v42 = vsub.s32 0, %v41
  %v43 = vrot.slane %v27, %v42
  %v45 = vadd.f32 %v43, %v38
  %v46 = vld [vmem:[%s1 + $0x1] sm:$0x1]
  %47 = vset.pattern.permute.xlu0 1
  %48 = vperm.xlu0 %47, %v26
  %v49 = vpop.permute.xlu0 %48
  %v51 = vlaneseq
  %v52 = vshrl.u32 %v51, 7
  %v53 = vsub.s32 0, %v52
  %v54 = vrot.slane %v46, %v53
  %v55 = vmul.f32 %v49, %v54
  %v56 = vadd.f32 %v45, %v55
  %v57 = vld [vmem:[%s1 + $0x2] sm:$0x1]
  %58 = vset.pattern.permute.xlu0 2
  %59 = vperm.xlu0 %58, %v26
  %v60 = vpop.permute.xlu0 %59
  %v62 = vlaneseq
  %v63 = vshrl.u32 %v62, 7
  %v64 = vsub.s32 0, %v63
  %v65 = vrot.slane %v57, %v64
  %v66 = vmul.f32 %v60, %v65
  %v67 = vadd.f32 %v56, %v66
  %v68 = vld [vmem:[%s1 + $0x3] sm:$0x1]
  %69 = vset.pattern.permute.xlu0 3
  %70 = vperm.xlu0 %69, %v26
  %v71 = vpop.permute.xlu0 %70
  %v73 = vlaneseq
  %v74 = vshrl.u32 %v73, 7
  %v75 = vsub.s32 0, %v74
  %v76 = vrot.slane %v68, %v75
  %v77 = vmul.f32 %v71, %v76
  %v78 = vadd.f32 %v67, %v77
  %v79 = vmax.f32 %v78, 0.0
  %v80 = vld [vmem:[%s3] sm:$0xff]
  %v81 = vld [vmem:[%s3 + $0x8] sm:$0xff]
  %v82 = vld [vmem:[%s3 + $0x10] sm:$0xff]
  %v83 = vld [vmem:[%s3 + $0x18] sm:$0xff]
  %v84 = vld [vmem:[%s3 + $0x20] sm:$0xff]
  %v85 = vld [vmem:[%s3 + $0x28] sm:$0xff]
  %v86 = vld [vmem:[%s3 + $0x30] sm:$0xff]
  %v87 = vld [vmem:[%s3 + $0x38] sm:$0xff]
  %v88 = vld [vmem:[%s4] sm:$0x1]
  %v90 = vlaneseq
  %v91 = vshrl.u32 %v90, 7
  %v92 = vsub.s32 0, %v91
  %v93 = vrot.slane %v88, %v92
  %vm95 = vcmask 523264
  %v97 = vsel %vm95, %v79, 0
  %99 = vmatprep.subr.mxu0 0.0
  %100 = vmatpush1.msra.mxu0 %v80
  %101 = vmatprep.subr.mxu0 0.0
  %102 = vmatpush1.msra.mxu0 %v81
  %103 = vmatprep.subr.mxu0 0.0
  %104 = vmatpush1.msra.mxu0 %v82
  %105 = vmatprep.subr.mxu0 0.0
  %106 = vmatpush1.msra.mxu0 %v83
  %107 = vmatprep.subr.mxu0 0.0
  %108 = vmatpush1.msra.mxu0 %v84
  %109 = vmatprep.subr.mxu0 0.0
  %110 = vmatpush1.msra.mxu0 %v85
  %111 = vmatprep.subr.mxu0 0.0
  %112 = vmatpush1.msra.mxu0 %v86
  %113 = vmatprep.subr.mxu0 0.0
  %114 = vmatpush1.msra.mxu0 %v87
  %115 = vmatprep.subr.mxu0 0.0
  %116 = vmatpush1.msra.mxu0 0.0
  %117 = vmatprep.subr.mxu0 0.0
  %118 = vmatpush1.msra.mxu0 0.0
  %119 = vmatprep.subr.mxu0 0.0
  %120 = vmatpush1.msra.mxu0 0.0
  %121 = vmatprep.subr.mxu0 0.0
  %122 = vmatpush1.msra.mxu0 0.0
  %123 = vmatprep.subr.mxu0 0.0
  %124 = vmatpush1.msra.mxu0 0.0
  %125 = vmatprep.subr.mxu0 0.0
  %126 = vmatpush1.msra.mxu0 0.0
  %127 = vmatprep.subr.mxu0 0.0
  %128 = vmatpush1.msra.mxu0 0.0
  %129 = vmatprep.subr.mxu0 0.0
  %130 = vmatpush1.msra.mxu0 0.0
  %131 = vmatprep.subr.mxu0 0.0
  %132 = vmatpush1.msra.mxu0 0.0
  %133 = vmatprep.subr.mxu0 0.0
  %134 = vmatpush1.msra.mxu0 0.0
  %135 = vmatprep.subr.mxu0 0.0
  %136 = vmatpush1.msra.mxu0 0.0
  %137 = vmatprep.subr.mxu0 0.0
  %138 = vmatpush1.msra.mxu0 0.0
  %139 = vmatprep.subr.mxu0 0.0
  %140 = vmatpush1.msra.mxu0 0.0
  %141 = vmatprep.subr.mxu0 0.0
  %142 = vmatpush1.msra.mxu0 0.0
  %143 = vmatprep.subr.mxu0 0.0
  %144 = vmatpush1.msra.mxu0 0.0
  %145 = vmatprep.subr.mxu0 0.0
  %146 = vmatpush1.msra.mxu0 0.0
  %147 = vmatprep.subr.mxu0 0.0
  %148 = vmatpush1.msra.mxu0 0.0
  %149 = vmatprep.subr.mxu0 0.0
  %150 = vmatpush1.msra.mxu0 0.0
  %151 = vmatprep.subr.mxu0 0.0
  %152 = vmatpush1.msra.mxu0 0.0
  %153 = vmatprep.subr.mxu0 0.0
  %154 = vmatpush1.msra.mxu0 0.0
  %155 = vmatprep.subr.mxu0 0.0
  %156 = vmatpush1.msra.mxu0 0.0
  %157 = vmatprep.subr.mxu0 0.0
  %158 = vmatpush1.msra.mxu0 0.0
  %159 = vmatprep.subr.mxu0 0.0
  %160 = vmatpush1.msra.mxu0 0.0
  %161 = vmatprep.subr.mxu0 0.0
  %162 = vmatpush1.msra.mxu0 0.0
  %163 = vmatprep.mubr.f32.mxu0 0.0
  %164 = vmatmul.mubr.f32.gmra.mrb[0].mxu0 %v97
  %v165 = vpop.f32.mrb[0].mxu0
  %v166 = vadd.f32 %v93, %v165
  %v167 = vpop.f32.mrb[0].mxu0
  %168 = vdwg.mxu0
  %v169 = vmax.f32 %v166, 0.0
  %v170 = vld [vmem:[%s5] sm:$0xff]
  %v171 = vld [vmem:[%s5 + $0x8] sm:$0xff]
  %v172 = vld [vmem:[%s5 + $0x10] sm:$0xff]
  %v173 = vld [vmem:[%s5 + $0x18] sm:$0xff]
  %v174 = vld [vmem:[%s5 + $0x20] sm:$0xff]
  %v175 = vld [vmem:[%s5 + $0x28] sm:$0xff]
  %v176 = vld [vmem:[%s5 + $0x30] sm:$0xff]
  %v177 = vld [vmem:[%s5 + $0x38] sm:$0xff]
  %v178 = vld [vmem:[%s6] sm:$0x1]
  %v180 = vlaneseq
  %v181 = vshrl.u32 %v180, 7
  %v182 = vsub.s32 0, %v181
  %v183 = vrot.slane %v178, %v182
  %v186 = vsel %vm95, %v169, 0
  %188 = vmatprep.subr.mxu0 0.0
  %189 = vmatpush1.msra.mxu0 %v170
  %190 = vmatprep.subr.mxu0 0.0
  %191 = vmatpush1.msra.mxu0 %v171
  %192 = vmatprep.subr.mxu0 0.0
  %193 = vmatpush1.msra.mxu0 %v172
  %194 = vmatprep.subr.mxu0 0.0
  %195 = vmatpush1.msra.mxu0 %v173
  %196 = vmatprep.subr.mxu0 0.0
  %197 = vmatpush1.msra.mxu0 %v174
  %198 = vmatprep.subr.mxu0 0.0
  %199 = vmatpush1.msra.mxu0 %v175
  %200 = vmatprep.subr.mxu0 0.0
  %201 = vmatpush1.msra.mxu0 %v176
  %202 = vmatprep.subr.mxu0 0.0
  %203 = vmatpush1.msra.mxu0 %v177
  %204 = vmatprep.subr.mxu0 0.0
  %205 = vmatpush1.msra.mxu0 0.0
  %206 = vmatprep.subr.mxu0 0.0
  %207 = vmatpush1.msra.mxu0 0.0
  %208 = vmatprep.subr.mxu0 0.0
  %209 = vmatpush1.msra.mxu0 0.0
  %210 = vmatprep.subr.mxu0 0.0
  %211 = vmatpush1.msra.mxu0 0.0
  %212 = vmatprep.subr.mxu0 0.0
  %213 = vmatpush1.msra.mxu0 0.0
  %214 = vmatprep.subr.mxu0 0.0
  %215 = vmatpush1.msra.mxu0 0.0
  %216 = vmatprep.subr.mxu0 0.0
  %217 = vmatpush1.msra.mxu0 0.0
  %218 = vmatprep.subr.mxu0 0.0
  %219 = vmatpush1.msra.mxu0 0.0
  %220 = vmatprep.subr.mxu0 0.0
  %221 = vmatpush1.msra.mxu0 0.0
  %222 = vmatprep.subr.mxu0 0.0
  %223 = vmatpush1.msra.mxu0 0.0
  %224 = vmatprep.subr.mxu0 0.0
  %225 = vmatpush1.msra.mxu0 0.0
  %226 = vmatprep.subr.mxu0 0.0
  %227 = vmatpush1.msra.mxu0 0.0
  %228 = vmatprep.subr.mxu0 0.0
  %229 = vmatpush1.msra.mxu0 0.0
  %230 = vmatprep.subr.mxu0 0.0
  %231 = vmatpush1.msra.mxu0 0.0
  %232 = vmatprep.subr.mxu0 0.0
  %233 = vmatpush1.msra.mxu0 0.0
  %234 = vmatprep.subr.mxu0 0.0
  %235 = vmatpush1.msra.mxu0 0.0
  %236 = vmatprep.subr.mxu0 0.0
  %237 = vmatpush1.msra.mxu0 0.0
  %238 = vmatprep.subr.mxu0 0.0
  %239 = vmatpush1.msra.mxu0 0.0
  %240 = vmatprep.subr.mxu0 0.0
  %241 = vmatpush1.msra.mxu0 0.0
  %242 = vmatprep.subr.mxu0 0.0
  %243 = vmatpush1.msra.mxu0 0.0
  %244 = vmatprep.subr.mxu0 0.0
  %245 = vmatpush1.msra.mxu0 0.0
  %246 = vmatprep.subr.mxu0 0.0
  %247 = vmatpush1.msra.mxu0 0.0
  %248 = vmatprep.subr.mxu0 0.0
  %249 = vmatpush1.msra.mxu0 0.0
  %250 = vmatprep.subr.mxu0 0.0
  %251 = vmatpush1.msra.mxu0 0.0
  %252 = vmatprep.mubr.f32.mxu0 0.0
  %253 = vmatmul.mubr.f32.gmra.mrb[0].mxu0 %v186
  %v254 = vpop.f32.mrb[0].mxu0
  %v255 = vadd.f32 %v183, %v254
  %v256 = vpop.f32.mrb[0].mxu0
  %257 = vdwg.mxu0
  %vm258 = vcmask 31744
  %259 = vst.msk [vmem:[%s7] sm:$0xff] %vm258, %v255
  // Predicated region
  $region30: #{diffusion_forward.1} parent=0 // pred_check
    _
  $region31: #{diffusion_forward.1} parent=0 // pred_check_branch
    %261 = sbr.rel (0) target = $region33
  $region32: #{diffusion_forward.1} parent=0 // pred_region
    _
  $region33: #{diffusion_forward.1} parent=0 // pred_fallthru
    _
  // Predicated region
  $region34: #{diffusion_forward.1} parent=0 // pred_check
    _
  $region35: #{diffusion_forward.1} parent=0 // pred_check_branch
    %263 = sbr.rel (0) target = $region37
  $region36: #{diffusion_forward.1} parent=0 // pred_region
    _
  $region37: #{diffusion_forward.1} parent=0 // pred_fallthru
    _

</llo_original>
